<compile_context>
chip_gen: v5e
topology: v5e:2x2
jax: 0.10.0
libtpu: 0.0.40
codegen_flags: <defaults>
</compile_context>

<pallas_src>
import jax
import jax.numpy as jnp
from jax.experimental import pallas as pl
from jax.experimental.pallas import tpu as pltpu

KH, KW = 1, 5
C_OUT = 32
NEG_SLOPE = 0.2
VMEM_LIMIT_BYTES = 48 * 1024 * 1024   # <= v7x 64 MiB physical; raises v5e 16 MiB default


# ----------------------------------------------------------------------------------
# Path A: large W_out (>= 128).  Row-tiled, per-channel scalar-FMA on (TH, W_out)
# slabs; output stored directly in the final (N, 32, H, W_out) layout (lane-dense).
# ----------------------------------------------------------------------------------
def conv1x5_lrelu_rowtile_kernel(x_ref, w_ref, b_ref, o_ref):
    # x_ref: (1, TH, W)             VMEM input tile
    # w_ref: (KW, C_OUT)            SMEM (scalar taps, resident across grid)
    # b_ref: (C_OUT,)               SMEM
    # o_ref: (1, C_OUT, TH, W_out)  VMEM output tile (W_out on lane axis)
    w_out = o_ref.shape[-1]
    x = x_ref[0]                                    # (TH, W)
    # Hoist the 5 shifted views once (one cross-lane shift each); reused by all
    # 32 output channels.  (Review item 9: materialized once per tile, not per ch.)
    taps = [x[:, k:k + w_out] for k in range(KW)]   # each (TH, W_out)
    for c in range(C_OUT):
        acc = taps[0] * w_ref[0, c] + b_ref[c]
        for k in range(1, KW):
            acc = acc + taps[k] * w_ref[k, c]
        # LeakyReLU(0.2) as mul+max (2 VALU ops instead of 3).
        o_ref[0, c] = jnp.maximum(acc, NEG_SLOPE * acc)


def _pick_tile_h(h, w_out, n):
    # Dominant VMEM cost is the output tile: TH * W_out * 32ch * 4B, double-buffered.
    # Cap one buffer at ~8 MiB -> total residency ~18-20 MiB, inside the explicit
    # 48 MiB vmem limit on every generation (v7x: 64 MiB physical).
    if h <= 8:
        return h                                    # full extent is always legal
    max_rows = max(8, (8 * 1024 * 1024) // (w_out * C_OUT * 4))
    th = min(h, max_rows)
    th = max(8, (th // 8) * 8)                      # multiple of 8; a TH that does
                                                    # not divide H is fine (masked)
    if n == 1:
        # v7x megacore: keep >= 2 grid steps along a parallel axis.
        th = min(th, max(8, ((pl.cdiv(h, 2) + 7) // 8) * 8))
    return th


def _forward_row_tiled(x3d, weight, bias, n, h, w, w_out):
    w_taps = jnp.transpose(weight[:, 0, 0, :])      # (KW, C_OUT)
    b1d = bias.reshape(C_OUT)
    th = _pick_tile_h(h, w_out, n)
    grid = (n, pl.cdiv(h, th))
    return pl.pallas_call(
        conv1x5_lrelu_rowtile_kernel,
        out_shape=jax.ShapeDtypeStruct((n, C_OUT, h, w_out), jnp.float32),
        grid=grid,
        in_specs=[
            pl.BlockSpec((1, th, w), lambda ni, hi: (ni, hi, 0)),
            pl.BlockSpec(memory_space=pltpu.MemorySpace.SMEM),   # weights, resident
            pl.BlockSpec(memory_space=pltpu.MemorySpace.SMEM),   # bias, resident
        ],
        out_specs=pl.BlockSpec((1, C_OUT, th, w_out),
                               lambda ni, hi: (ni, 0, hi, 0)),
        compiler_params=pltpu.CompilerParams(
            dimension_semantics=("parallel", "parallel"),
            vmem_limit_bytes=VMEM_LIMIT_BYTES),
    )(x3d, w_taps, b1d)


# ----------------------------------------------------------------------------------
# Path B: small W_out (< 128).  Taps are stacked + flattened wrapper-side so the
# kernel's compute axis is H*W_out (lane-dense); all FMAs, the LeakyReLU and the
# store operate on dense (32, L_tile) slabs.
# ----------------------------------------------------------------------------------
def conv1x5_lrelu_dense_kernel(t_ref, w_ref, b_ref, o_ref):
    # t_ref: (1, KW, LT)   pre-shifted, flattened taps
    # w_ref: (C_OUT, KW)   VMEM, resident
    # b_ref: (C_OUT, 1)    VMEM, resident
    # o_ref: (1, C_OUT, LT)
    t = t_ref[0]                                    # (KW, LT)
    # Outer-product broadcast FMAs: (C_OUT,1) * (1,LT) -> (C_OUT,LT), fully dense.
    acc = w_ref[:, 0:1] * t[0:1, :] + b_ref[...]
    for k in range(1, KW):
        acc = acc + w_ref[:, k:k + 1] * t[k:k + 1, :]
    o_ref[0] = jnp.maximum(acc, NEG_SLOPE * acc)    # LeakyReLU(0.2), one dense store


def _pick_tile_l(l, n):
    # Output tile: 32ch * LT * 4B per buffer; cap at ~8 MiB -> LT <= 65536 lanes.
    max_lanes = 65536
    if l <= max_lanes and (n >= 2 or l <= 256):
        return l                                    # full-extent last dim is legal
    lt = max(128, (min(l, max_lanes) // 128) * 128)  # multiple of 128; partial last
                                                     # block is masked
    if n == 1:
        # v7x megacore: keep >= 2 grid steps along a parallel axis.
        lt = min(lt, max(128, ((pl.cdiv(l, 2) + 127) // 128) * 128))
    return lt


def _forward_lane_dense(x3d, weight, bias, n, h, w, w_out):
    l = h * w_out
    # Layout plumbing in the wrapper (not compute hoisting): build the 5 shifted tap
    # slabs, flattened row-major so they are contiguous with the output layout.
    taps = jnp.stack([x3d[:, :, k:k + w_out] for k in range(KW)], axis=1)  # (N,KW,H,Wout)
    taps = taps.reshape(n, KW, l)
    w2d = weight[:, 0, 0, :]                        # (C_OUT, KW)
    b2d = bias.reshape(C_OUT, 1)

    lt = _pick_tile_l(l, n)
    grid = (n, pl.cdiv(l, lt))
    out = pl.pallas_call(
        conv1x5_lrelu_dense_kernel,
        out_shape=jax.ShapeDtypeStruct((n, C_OUT, l), jnp.float32),
        grid=grid,
        in_specs=[
            pl.BlockSpec((1, KW, lt), lambda ni, li: (ni, 0, li)),
            pl.BlockSpec((C_OUT, KW), lambda ni, li: (0, 0)),    # weights, resident
            pl.BlockSpec((C_OUT, 1), lambda ni, li: (0, 0)),     # bias, resident
        ],
        out_specs=pl.BlockSpec((1, C_OUT, lt), lambda ni, li: (ni, 0, li)),
        compiler_params=pltpu.CompilerParams(
            dimension_semantics=("parallel", "parallel"),
            vmem_limit_bytes=VMEM_LIMIT_BYTES),
    )(taps, w2d, b2d)
    # Free reshape: (N, C_OUT, H*W_out) and (N, C_OUT, H, W_out) share the layout.
    return out.reshape(n, C_OUT, h, w_out)


# ----------------------------------------------------------------------------------
# Public entry point
# ----------------------------------------------------------------------------------
def random_cnn_style_forward(x_nchw, weight, bias):
    """x_nchw: (N, 1, H, W) f32; weight: (32, 1, 1, 5) f32; bias: (32,) f32."""
    n, c, h, w = x_nchw.shape
    assert c == 1, "encoder1 expects a single input channel"
    assert w >= KW, f"input width {w} must be >= kernel width {KW}"
    w_out = w - (KW - 1)
    x3d = x_nchw.reshape(n, h, w)                   # squeeze channel dim (free)
    if w_out < 128:
        return _forward_lane_dense(x3d, weight, bias, n, h, w, w_out)
    return _forward_row_tiled(x3d, weight, bias, n, h, w, w_out)


def _reference_forward(x_nchw, weight, bias):
    y = jax.lax.conv_general_dilated(
        x_nchw, weight, window_strides=(1, 1), padding="VALID",
        dimension_numbers=("NCHW", "OIHW", "NCHW"),
        precision=jax.lax.Precision.HIGHEST)
    y = y + bias[None, :, None, None]
    return jnp.where(y > 0, y, NEG_SLOPE * y)


if __name__ == "__main__":
    key = jax.random.PRNGKey(0)
    k_x, k_w, k_b, k_x2 = jax.random.split(key, 4)

    # Deterministic synthetic parameters (shapes match nn.Conv2d(1, 32, (1, 5))).
    fan_in = 1 * KH * KW
    bound = 1.0 / (fan_in ** 0.5)
    weight = jax.random.uniform(k_w, (C_OUT, 1, KH, KW), jnp.float32, -bound, bound)
    bias = jax.random.uniform(k_b, (C_OUT,), jnp.float32, -bound, bound)

    # Case 1 (lane-dense path): N=2, C=1, H=16, W=16 -> out (2, 32, 16, 12)
    N, H, W = 2, 16, 16
    x = jax.random.normal(k_x, (N, 1, H, W), dtype=jnp.float32)
    out = jax.block_until_ready(random_cnn_style_forward(x, weight, bias))
    ref = _reference_forward(x, weight, bias)
    assert out.shape == (N, C_OUT, H, W - 4), out.shape
    assert jnp.allclose(out, ref, atol=1e-5, rtol=1e-5)

    # Case 2 (row-tiled path, W_out >= 128; N=1 exercises the >=2-step grid rule):
    N2, H2, W2 = 1, 16, 144
    x2 = jax.random.normal(k_x2, (N2, 1, H2, W2), dtype=jnp.float32)
    out2 = jax.block_until_ready(random_cnn_style_forward(x2, weight, bias))
    ref2 = _reference_forward(x2, weight, bias)
    assert out2.shape == (N2, C_OUT, H2, W2 - 4), out2.shape
    assert jnp.allclose(out2, ref2, atol=1e-5, rtol=1e-5)

    print("KERNEL_OK")
</pallas_src>

<mosaic_0001>
module attributes {stable_mosaic.version = 11 : i64} {
  func.func @conv1x5_lrelu_dense_kernel(%arg0: i32, %arg1: i32, %arg2: memref<1x5x192xf32, #tpu.memory_space<vmem>>, %arg3: memref<32x5xf32, #tpu.memory_space<vmem>>, %arg4: memref<32x1xf32, #tpu.memory_space<vmem>>, %arg5: memref<1x32x192xf32, #tpu.memory_space<vmem>>) attributes {dimension_semantics = [#tpu.dimension_semantics<parallel>, #tpu.dimension_semantics<parallel>], iteration_bounds = array<i64: 2, 1>, scalar_prefetch = 0 : i64, scratch_operands = 0 : i64, tpu.core_type = #tpu.core_type<tc>, window_params = [{transform_indices = @transform_0, window_bounds = array<i64: 1, 5, 192>}, {pipeline_mode = #tpu.pipeline_mode<synchronous>, transform_indices = @transform_1, window_bounds = array<i64: 32, 5>}, {pipeline_mode = #tpu.pipeline_mode<synchronous>, transform_indices = @transform_2, window_bounds = array<i64: 32, 1>}, {transform_indices = @transform_3, window_bounds = array<i64: 1, 32, 192>}]} {
    %c0 = arith.constant 0 : index
    %c0_0 = arith.constant 0 : index
    %c0_1 = arith.constant 0 : index
    %0 = vector.load %arg2[%c0, %c0_0, %c0_1] : memref<1x5x192xf32, #tpu.memory_space<vmem>>, vector<1x5x192xf32>
    %1 = vector.shape_cast %0 : vector<1x5x192xf32> to vector<5x192xf32>
    %c0_2 = arith.constant 0 : index
    %c0_3 = arith.constant 0 : index
    %2 = vector.load %arg3[%c0_2, %c0_3] : memref<32x5xf32, #tpu.memory_space<vmem>>, vector<32x1xf32>
    %3 = vector.extract_strided_slice %1 {offsets = [0, 0], sizes = [1, 192], strides = [1, 1]} : vector<5x192xf32> to vector<1x192xf32>
    %4 = vector.broadcast %2 : vector<32x1xf32> to vector<32x192xf32>
    %5 = vector.broadcast %3 : vector<1x192xf32> to vector<32x192xf32>
    %6 = arith.mulf %4, %5 : vector<32x192xf32>
    %c0_4 = arith.constant 0 : index
    %c0_5 = arith.constant 0 : index
    %7 = vector.load %arg4[%c0_4, %c0_5] : memref<32x1xf32, #tpu.memory_space<vmem>>, vector<32x1xf32>
    %8 = vector.broadcast %7 : vector<32x1xf32> to vector<32x192xf32>
    %9 = arith.addf %6, %8 : vector<32x192xf32>
    %c0_6 = arith.constant 0 : index
    %c1 = arith.constant 1 : index
    %10 = vector.load %arg3[%c0_6, %c1] : memref<32x5xf32, #tpu.memory_space<vmem>>, vector<32x1xf32>
    %11 = vector.extract_strided_slice %1 {offsets = [1, 0], sizes = [1, 192], strides = [1, 1]} : vector<5x192xf32> to vector<1x192xf32>
    %12 = vector.broadcast %10 : vector<32x1xf32> to vector<32x192xf32>
    %13 = vector.broadcast %11 : vector<1x192xf32> to vector<32x192xf32>
    %14 = arith.mulf %12, %13 : vector<32x192xf32>
    %15 = arith.addf %9, %14 : vector<32x192xf32>
    %c0_7 = arith.constant 0 : index
    %c2 = arith.constant 2 : index
    %16 = vector.load %arg3[%c0_7, %c2] : memref<32x5xf32, #tpu.memory_space<vmem>>, vector<32x1xf32>
    %17 = vector.extract_strided_slice %1 {offsets = [2, 0], sizes = [1, 192], strides = [1, 1]} : vector<5x192xf32> to vector<1x192xf32>
    %18 = vector.broadcast %16 : vector<32x1xf32> to vector<32x192xf32>
    %19 = vector.broadcast %17 : vector<1x192xf32> to vector<32x192xf32>
    %20 = arith.mulf %18, %19 : vector<32x192xf32>
    %21 = arith.addf %15, %20 : vector<32x192xf32>
    %c0_8 = arith.constant 0 : index
    %c3 = arith.constant 3 : index
    %22 = vector.load %arg3[%c0_8, %c3] : memref<32x5xf32, #tpu.memory_space<vmem>>, vector<32x1xf32>
    %23 = vector.extract_strided_slice %1 {offsets = [3, 0], sizes = [1, 192], strides = [1, 1]} : vector<5x192xf32> to vector<1x192xf32>
    %24 = vector.broadcast %22 : vector<32x1xf32> to vector<32x192xf32>
    %25 = vector.broadcast %23 : vector<1x192xf32> to vector<32x192xf32>
    %26 = arith.mulf %24, %25 : vector<32x192xf32>
    %27 = arith.addf %21, %26 : vector<32x192xf32>
    %c0_9 = arith.constant 0 : index
    %c4 = arith.constant 4 : index
    %28 = vector.load %arg3[%c0_9, %c4] : memref<32x5xf32, #tpu.memory_space<vmem>>, vector<32x1xf32>
    %29 = vector.extract_strided_slice %1 {offsets = [4, 0], sizes = [1, 192], strides = [1, 1]} : vector<5x192xf32> to vector<1x192xf32>
    %30 = vector.broadcast %28 : vector<32x1xf32> to vector<32x192xf32>
    %31 = vector.broadcast %29 : vector<1x192xf32> to vector<32x192xf32>
    %32 = arith.mulf %30, %31 : vector<32x192xf32>
    %33 = arith.addf %27, %32 : vector<32x192xf32>
    %cst = arith.constant 2.000000e-01 : f32
    %34 = vector.broadcast %cst : f32 to vector<32x192xf32>
    %35 = arith.mulf %34, %33 : vector<32x192xf32>
    %36 = arith.maximumf %33, %35 : vector<32x192xf32>
    %c0_10 = arith.constant 0 : index
    %c0_11 = arith.constant 0 : index
    %c0_12 = arith.constant 0 : index
    %37 = vector.load %arg5[%c0_10, %c0_11, %c0_12] : memref<1x32x192xf32, #tpu.memory_space<vmem>>, vector<1x32x192xf32>
    %38 = vector.shape_cast %37 : vector<1x32x192xf32> to vector<32x192xf32>
    %39 = vector.shape_cast %36 : vector<32x192xf32> to vector<1x32x192xf32>
    tpu.vector_store %arg5[%c0_10, %c0_11, %c0_12], %39 {strides = array<i32>} : memref<1x32x192xf32, #tpu.memory_space<vmem>>, vector<1x32x192xf32>,
    return
  }
  func.func @transform_0(%arg0: i32, %arg1: i32) -> (i32, i32, i32) {
    %c0_i32 = arith.constant 0 : i32
    %c0_i32_0 = arith.constant 0 : i32
    return %arg0, %c0_i32, %arg1 : i32, i32, i32
  }
  func.func @transform_1(%arg0: i32, %arg1: i32) -> (i32, i32) {
    %c0_i32 = arith.constant 0 : i32
    %c0_i32_0 = arith.constant 0 : i32
    %c0_i32_1 = arith.constant 0 : i32
    return %c0_i32, %c0_i32_0 : i32, i32
  }
  func.func @transform_2(%arg0: i32, %arg1: i32) -> (i32, i32) {
    %c0_i32 = arith.constant 0 : i32
    %c0_i32_0 = arith.constant 0 : i32
    %c0_i32_1 = arith.constant 0 : i32
    return %c0_i32, %c0_i32_0 : i32, i32
  }
  func.func @transform_3(%arg0: i32, %arg1: i32) -> (i32, i32, i32) {
    %c0_i32 = arith.constant 0 : i32
    %c0_i32_0 = arith.constant 0 : i32
    return %arg0, %c0_i32, %arg1 : i32, i32, i32
  }
}

</mosaic_0001>

<llo_original>
// kernel: tpu_custom_call.1
$region0: #{tpu_custom_call.1}
  #allocation0 [shape = 'u32[]', space=smem, size = 0x4, offset = 0x4, fixed_abs, tag = 'smem constant byte address 0x4 - core index']
  #allocation1 [shape = 'u32[72,128]{1,0:T(1,128)}', space=vmem, size = 0x9000, scoped, tag = 'internal scratch']
  %s0 = inlined_call_operand.vmem [shape: f32[2,5,192], index: 0, kind: input, shape index: {}]
  %s1 = inlined_call_operand.vmem [shape: f32[32,5], index: 1, kind: input, shape index: {}]
  %s2 = inlined_call_operand.vmem [shape: f32[32,1], index: 2, kind: input, shape index: {}]
  %s3 = inlined_call_operand.hbm [shape: f32[2,32,192], index: 3, kind: output, shape index: {}]
  %s4 = sld [smem:[#allocation0]]
  $region45: #{tpu_custom_call.1} parent=0
    _
  %s6 = ssub.s32 1, %s4
  %s7 = scalar_select 0, %s6, %s4
  $region1: #{tpu_custom_call.1} parent=0
    #allocation2 [shape = 'u8[65536]{0}', space=vmem, size = 0x10000, scoped, tag = 'output window, operand 0']
    #allocation3 [shape = 's32[2]{0}', space=sflag, size = 0x8, scoped, tag = 'scoped memory for tpu_custom_call.1']
    %8 = vsyncpa [#allocation3], 0
    %s9 = scalar_lea.sflag [#allocation3], 1
    %10 = vsyncpa %s9, 0
    loop: start=0, step=1, limit=4
    $region2: #{tpu_custom_call.1} parent=1 // loop_pre_header
      _
    $region3: #{tpu_custom_call.1} parent=1 // loop_header
      %s12 = sphi 0, %s16
      %p13 = scmp.ge.s32.totalorder %s12, 4
      %s19 = sphi 0, %s31
      %s20 = sphi 0, %s27
      %s21 = sphi 0, %s19
      %s22 = sphi 0, %s20
      %s23 = sphi 0, %s21
      %s24 = sphi 0, %s22
      %s36 = sphi 0, %s38
      %s39 = sphi 0, %s36
      %s40 = sphi 0, %s39
      %s56 = sphi 0, %s40
      %s60 = sphi 0, %s60
      %s62 = sphi 0, %s60
      %s63 = sphi 0, %s62
      %s77 = sphi 0, %s63
      %s81 = sphi 0, %s81
      %s83 = sphi 0, %s81
      %s84 = sphi 0, %s83
      %s98 = sphi 0, %s84
      %s106 = sphi 0, %s108
      %s109 = sphi 0, %s106
      %s110 = sphi 0, %s109
      %s126 = sphi 0, %s110
    $region4: #{tpu_custom_call.1} parent=1 // loop_header_branch
      %15 = sbr.rel (%p13) target = $region8
    $region5: #{tpu_custom_call.1} parent=1 // loop_body
      %s17 = ssub.s32 %s12, 1
      %s18 = ssub.s32 %s12, 2
      %s25 = sadd.s32 1, %s20
      %p26 = scmp.ge.s32.totalorder %s25, 1
      %s27 = scalar_select %p26, 0, %s25
      %s28 = sadd.s32 1, %s19
      %s29 = scalar_select %p26, %s28, %s19
      %p30 = scmp.ge.s32.totalorder %s29, 2
      %s31 = scalar_select %p30, 0, %s29
      %s32 = ssub.s32 %s19, %s31
      %s33 = ssub.s32 %s20, %s27
      %s34 = sor.u32 %s32, %s33
      %p35 = scmp.eq.s32.totalorder %s34, 0
      %s37 = sadd.s32 %s36, 1
      %s38 = scalar_select %p35, %s36, %s37
      %p41 = pneg %p35
      %p42 = scmp.eq.s32.totalorder %s12, 1
      %p43 = por %p41, %p42
      %p44 = scmp.ne.s32.totalorder %s36, %s39
      %p45 = scmp.eq.s32.totalorder %s12, 0
      %p46 = por %p44, %p45
      %p47 = scmp.ne.s32.totalorder %s36, %s39
      %p48 = scmp.eq.s32.totalorder %s17, 1
      %p49 = por %p47, %p48
      %p50 = scmp.ne.s32.totalorder %s39, %s40
      %p51 = scmp.eq.s32.totalorder %s17, 0
      %p52 = por %p50, %p51
      %p53 = scmp.ne.s32.totalorder %s39, %s40
      %p54 = scmp.eq.s32.totalorder %s18, 1
      %p55 = por %p53, %p54
      %p57 = scmp.ne.s32.totalorder %s40, %s56
      %p58 = scmp.eq.s32.totalorder %s18, 0
      %p59 = por %p57, %p58
      %s61 = sadd.s32 %s60, 1
      %p64 = scmp.eq.s32.totalorder %s12, 1
      %p65 = scmp.ne.s32.totalorder %s60, %s62
      %p66 = scmp.eq.s32.totalorder %s12, 0
      %p67 = por %p65, %p66
      %p68 = scmp.ne.s32.totalorder %s60, %s62
      %p69 = scmp.eq.s32.totalorder %s17, 1
      %p70 = por %p68, %p69
      %p71 = scmp.ne.s32.totalorder %s62, %s63
      %p72 = scmp.eq.s32.totalorder %s17, 0
      %p73 = por %p71, %p72
      %p74 = scmp.ne.s32.totalorder %s62, %s63
      %p75 = scmp.eq.s32.totalorder %s18, 1
      %p76 = por %p74, %p75
      %p78 = scmp.ne.s32.totalorder %s63, %s77
      %p79 = scmp.eq.s32.totalorder %s18, 0
      %p80 = por %p78, %p79
      %s82 = sadd.s32 %s81, 1
      %p85 = scmp.eq.s32.totalorder %s12, 1
      %p86 = scmp.ne.s32.totalorder %s81, %s83
      %p87 = scmp.eq.s32.totalorder %s12, 0
      %p88 = por %p86, %p87
      %p89 = scmp.ne.s32.totalorder %s81, %s83
      %p90 = scmp.eq.s32.totalorder %s17, 1
      %p91 = por %p89, %p90
      %p92 = scmp.ne.s32.totalorder %s83, %s84
      %p93 = scmp.eq.s32.totalorder %s17, 0
      %p94 = por %p92, %p93
      %p95 = scmp.ne.s32.totalorder %s83, %s84
      %p96 = scmp.eq.s32.totalorder %s18, 1
      %p97 = por %p95, %p96
      %p99 = scmp.ne.s32.totalorder %s84, %s98
      %p100 = scmp.eq.s32.totalorder %s18, 0
      %p101 = por %p99, %p100
      %s102 = ssub.s32 %s19, %s31
      %s103 = ssub.s32 %s20, %s27
      %s104 = sor.u32 %s102, %s103
      %p105 = scmp.eq.s32.totalorder %s104, 0
      %s107 = sadd.s32 %s106, 1
      %s108 = scalar_select %p105, %s106, %s107
      %p111 = pneg %p105
      %p112 = scmp.eq.s32.totalorder %s12, 1
      %p113 = por %p111, %p112
      %p114 = scmp.ne.s32.totalorder %s106, %s109
      %p115 = scmp.eq.s32.totalorder %s12, 0
      %p116 = por %p114, %p115
      %p117 = scmp.ne.s32.totalorder %s106, %s109
      %p118 = scmp.eq.s32.totalorder %s17, 1
      %p119 = por %p117, %p118
      %p120 = scmp.ne.s32.totalorder %s109, %s110
      %p121 = scmp.eq.s32.totalorder %s17, 0
      %p122 = por %p120, %p121
      %p123 = scmp.ne.s32.totalorder %s109, %s110
      %p124 = scmp.eq.s32.totalorder %s18, 1
      %p125 = por %p123, %p124
      %p127 = scmp.ne.s32.totalorder %s110, %s126
      %p128 = scmp.eq.s32.totalorder %s18, 0
      %p129 = por %p127, %p128
      %p130 = scmp.le.s32.totalorder 1, %s12
      %p131 = scmp.lt.s32.totalorder %s12, 3
      %p132 = pnand %p130, %p131
      %p133 = pneg %p132
      // Predicated region
      $region9: #{tpu_custom_call.1} parent=5 // pred_check
        _
      $region10: #{tpu_custom_call.1} parent=5 // pred_check_branch
        %135 = sbr.rel (%p132) target = $region12
      $region11: #{tpu_custom_call.1} parent=5 // pred_region
        %s136 = ssub.s32 %s12, 1
        // Predicated region
        $region13: #{tpu_custom_call.1} parent=11 // pred_check
          %p137 = pneg %p73
        $region14: #{tpu_custom_call.1} parent=11 // pred_check_branch
          %139 = sbr.rel (%p137) target = $region16
        $region15: #{tpu_custom_call.1} parent=11 // pred_region
          _
        $region16: #{tpu_custom_call.1} parent=11 // pred_fallthru
          _
        // Predicated region
        $region17: #{tpu_custom_call.1} parent=11 // pred_check
          %p140 = pneg %p94
        $region18: #{tpu_custom_call.1} parent=11 // pred_check_branch
          %142 = sbr.rel (%p140) target = $region20
        $region19: #{tpu_custom_call.1} parent=11 // pred_region
          _
        $region20: #{tpu_custom_call.1} parent=11 // pred_fallthru
          _
      $region12: #{tpu_custom_call.1} parent=5 // pred_fallthru
        _
      %p143 = scmp.lt.s32.totalorder %s12, 2
      // Predicated region
      $region21: #{tpu_custom_call.1} parent=5 // pred_check
        %p144 = pneg %p143
      $region22: #{tpu_custom_call.1} parent=5 // pred_check_branch
        %146 = sbr.rel (%p144) target = $region24
      $region23: #{tpu_custom_call.1} parent=5 // pred_region
        // Predicated region
        $region25: #{tpu_custom_call.1} parent=23 // pred_check
          %p147 = pneg %p46
        $region26: #{tpu_custom_call.1} parent=23 // pred_check_branch
          %149 = sbr.rel (%p147) target = $region28
        $region27: #{tpu_custom_call.1} parent=23 // pred_region
          %s150 = smul.u32 2, %s20
          %p151 = scmp.lt.s32.totalorder %s19, 1
          %s152 = scalar_select %p151, %s19, 1
          %p153 = scmp.lt.s32.totalorder %s150, 1
          %s154 = scalar_select %p153, %s150, 1
          %s155 = smul.addr %s152, 2
          %s156 = sadd.s32 %s154, %s155
          %s157 = smul.addr %s156, 8
          %s158 = scalar_lea.vmem %s0, %s157
          %s159 = smul.u32 2, %s20
        $region28: #{tpu_custom_call.1} parent=23 // pred_fallthru
          _
      $region24: #{tpu_custom_call.1} parent=5 // pred_fallthru
        _
      %p160 = scmp.le.s32.totalorder 1, %s12
      %p161 = scmp.lt.s32.totalorder %s12, 3
      %p162 = pnand %p160, %p161
      %p163 = pneg %p162
      // Predicated region
      $region29: #{tpu_custom_call.1} parent=5 // pred_check
        _
      $region30: #{tpu_custom_call.1} parent=5 // pred_check_branch
        %165 = sbr.rel (%p162) target = $region32
      $region31: #{tpu_custom_call.1} parent=5 // pred_region
        %s166 = ssub.s32 %s12, 1
        %s167 = smul.u32 2, %s22
        %p168 = scmp.lt.s32.totalorder %s21, 1
        %s169 = scalar_select %p168, %s21, 1
        %p170 = scmp.lt.s32.totalorder %s167, 1
        %s171 = scalar_select %p170, %s167, 1
        %s172 = smul.addr %s169, 2
        %s173 = sadd.s32 %s171, %s172
        %s174 = smul.addr %s173, 8
        %s175 = scalar_lea.vmem %s0, %s174
        %p176 = pneg %p52
        %p177 = pneg %p49
        %p178 = pneg %p73
        %p179 = pneg %p70
        %p180 = pneg %p94
        %p181 = pneg %p91
        %p182 = pneg %p122
        %p183 = pneg %p119
        %s184 = sand.u32 %s109, 1
        %s185 = scalar_lea.sflag [#allocation3], %s184
        %s186 = sand.u32 %s109, 1
        %s187 = smul.addr %s186, 64
        %s188 = scalar_lea.vmem [#allocation2], %s187
        %s189 = smul.u32 2, %s22
        %p190 = scmp.lt.s32.totalorder %s21, 1
        %s191 = scalar_select %p190, %s21, 1
        %p192 = scmp.lt.s32.totalorder %s189, 1
        %s193 = scalar_select %p192, %s189, 1
        %s194 = smul.addr %s191, 2
        %s195 = sadd.s32 %s193, %s194
        %s196 = smul.addr %s195, 8
        %s197 = scalar_lea.vmem %s0, %s196
        %s198 = smul.u32 2, %s22
        %s199 = smul.u32 2, %s22
        %v200 = vld [vmem:[%s197] sm:$0x1f]
        %v201 = vld [vmem:[%s197 + $0x8] sm:$0x1f]
        %v202 = vld [vmem:[%s1] sm:$0xff]
        %v203 = vld [vmem:[%s1 + $0x8] sm:$0xff]
        %v204 = vld [vmem:[%s1 + $0x10] sm:$0xff]
        %v205 = vld [vmem:[%s1 + $0x18] sm:$0xff]
        %207 = vset.pattern.permute.xlu0 0
        %208 = vperm.xlu0 %207, %v202
        %v209 = vpop.permute.xlu0 %208
        %212 = vset.pattern.permute.xlu0 0
        %213 = vperm.xlu0 %212, %v203
        %v214 = vpop.permute.xlu0 %213
        %217 = vset.pattern.permute.xlu0 0
        %218 = vperm.xlu0 %217, %v204
        %v219 = vpop.permute.xlu0 %218
        %222 = vset.pattern.permute.xlu0 0
        %223 = vperm.xlu0 %222, %v205
        %v224 = vpop.permute.xlu0 %223
        %v226 = vperm.slane %v200, 0
        %v227 = vperm.slane %v201, 0
        %v228 = vmul.f32 %v209, %v226
        %v229 = vmul.f32 %v209, %v227
        %v230 = vmul.f32 %v214, %v226
        %v231 = vmul.f32 %v214, %v227
        %v232 = vmul.f32 %v219, %v226
        %v233 = vmul.f32 %v219, %v227
        %v234 = vmul.f32 %v224, %v226
        %v235 = vmul.f32 %v224, %v227
        %v236 = vld [vmem:[%s2] sm:$0xff]
        %v237 = vld [vmem:[%s2 + $0x8] sm:$0xff]
        %v238 = vld [vmem:[%s2 + $0x10] sm:$0xff]
        %v239 = vld [vmem:[%s2 + $0x18] sm:$0xff]
        %241 = vset.pattern.permute.xlu0 0
        %242 = vperm.xlu0 %241, %v236
        %v243 = vpop.permute.xlu0 %242
        %246 = vset.pattern.permute.xlu0 0
        %247 = vperm.xlu0 %246, %v237
        %v248 = vpop.permute.xlu0 %247
        %251 = vset.pattern.permute.xlu0 0
        %252 = vperm.xlu0 %251, %v238
        %v253 = vpop.permute.xlu0 %252
        %256 = vset.pattern.permute.xlu0 0
        %257 = vperm.xlu0 %256, %v239
        %v258 = vpop.permute.xlu0 %257
        %v260 = vadd.f32 %v228, %v243
        %v261 = vadd.f32 %v229, %v243
        %v262 = vadd.f32 %v230, %v248
        %v263 = vadd.f32 %v231, %v248
        %v264 = vadd.f32 %v232, %v253
        %v265 = vadd.f32 %v233, %v253
        %v266 = vadd.f32 %v234, %v258
        %v267 = vadd.f32 %v235, %v258
        %268 = vset.pattern.permute.xlu0 1
        %269 = vperm.xlu0 %268, %v202
        %v270 = vpop.permute.xlu0 %269
        %272 = vset.pattern.permute.xlu0 1
        %273 = vperm.xlu0 %272, %v203
        %v274 = vpop.permute.xlu0 %273
        %276 = vset.pattern.permute.xlu0 1
        %277 = vperm.xlu0 %276, %v204
        %v278 = vpop.permute.xlu0 %277
        %280 = vset.pattern.permute.xlu0 1
        %281 = vperm.xlu0 %280, %v205
        %v282 = vpop.permute.xlu0 %281
        %v284 = vperm.slane %v200, 1
        %v285 = vperm.slane %v201, 1
        %v286 = vmul.f32 %v270, %v284
        %v287 = vmul.f32 %v270, %v285
        %v288 = vmul.f32 %v274, %v284
        %v289 = vmul.f32 %v274, %v285
        %v290 = vmul.f32 %v278, %v284
        %v291 = vmul.f32 %v278, %v285
        %v292 = vmul.f32 %v282, %v284
        %v293 = vmul.f32 %v282, %v285
        %v294 = vadd.f32 %v260, %v286
        %v295 = vadd.f32 %v261, %v287
        %v296 = vadd.f32 %v262, %v288
        %v297 = vadd.f32 %v263, %v289
        %v298 = vadd.f32 %v264, %v290
        %v299 = vadd.f32 %v265, %v291
        %v300 = vadd.f32 %v266, %v292
        %v301 = vadd.f32 %v267, %v293
        %302 = vset.pattern.permute.xlu0 2
        %303 = vperm.xlu0 %302, %v202
        %v304 = vpop.permute.xlu0 %303
        %306 = vset.pattern.permute.xlu0 2
        %307 = vperm.xlu0 %306, %v203
        %v308 = vpop.permute.xlu0 %307
        %310 = vset.pattern.permute.xlu0 2
        %311 = vperm.xlu0 %310, %v204
        %v312 = vpop.permute.xlu0 %311
        %314 = vset.pattern.permute.xlu0 2
        %315 = vperm.xlu0 %314, %v205
        %v316 = vpop.permute.xlu0 %315
        %v318 = vperm.slane %v200, 2
        %v319 = vperm.slane %v201, 2
        %v320 = vmul.f32 %v304, %v318
        %v321 = vmul.f32 %v304, %v319
        %v322 = vmul.f32 %v308, %v318
        %v323 = vmul.f32 %v308, %v319
        %v324 = vmul.f32 %v312, %v318
        %v325 = vmul.f32 %v312, %v319
        %v326 = vmul.f32 %v316, %v318
        %v327 = vmul.f32 %v316, %v319
        %v328 = vadd.f32 %v294, %v320
        %v329 = vadd.f32 %v295, %v321
        %v330 = vadd.f32 %v296, %v322
        %v331 = vadd.f32 %v297, %v323
        %v332 = vadd.f32 %v298, %v324
        %v333 = vadd.f32 %v299, %v325
        %v334 = vadd.f32 %v300, %v326
        %v335 = vadd.f32 %v301, %v327
        %336 = vset.pattern.permute.xlu0 3
        %337 = vperm.xlu0 %336, %v202
        %v338 = vpop.permute.xlu0 %337
        %340 = vset.pattern.permute.xlu0 3
        %341 = vperm.xlu0 %340, %v203
        %v342 = vpop.permute.xlu0 %341
        %344 = vset.pattern.permute.xlu0 3
        %345 = vperm.xlu0 %344, %v204
        %v346 = vpop.permute.xlu0 %345
        %348 = vset.pattern.permute.xlu0 3
        %349 = vperm.xlu0 %348, %v205
        %v350 = vpop.permute.xlu0 %349
        %v352 = vperm.slane %v200, 3
        %v353 = vperm.slane %v201, 3
        %v354 = vmul.f32 %v338, %v352
        %v355 = vmul.f32 %v338, %v353
        %v356 = vmul.f32 %v342, %v352
        %v357 = vmul.f32 %v342, %v353
        %v358 = vmul.f32 %v346, %v352
        %v359 = vmul.f32 %v346, %v353
        %v360 = vmul.f32 %v350, %v352
        %v361 = vmul.f32 %v350, %v353
        %v362 = vadd.f32 %v328, %v354
        %v363 = vadd.f32 %v329, %v355
        %v364 = vadd.f32 %v330, %v356
        %v365 = vadd.f32 %v331, %v357
        %v366 = vadd.f32 %v332, %v358
        %v367 = vadd.f32 %v333, %v359
        %v368 = vadd.f32 %v334, %v360
        %v369 = vadd.f32 %v335, %v361
        %370 = vset.pattern.permute.xlu0 4
        %371 = vperm.xlu0 %370, %v202
        %v372 = vpop.permute.xlu0 %371
        %374 = vset.pattern.permute.xlu0 4
        %375 = vperm.xlu0 %374, %v203
        %v376 = vpop.permute.xlu0 %375
        %378 = vset.pattern.permute.xlu0 4
        %379 = vperm.xlu0 %378, %v204
        %v380 = vpop.permute.xlu0 %379
        %382 = vset.pattern.permute.xlu0 4
        %383 = vperm.xlu0 %382, %v205
        %v384 = vpop.permute.xlu0 %383
        %v386 = vperm.slane %v200, 4
        %v387 = vperm.slane %v201, 4
        %v388 = vmul.f32 %v372, %v386
        %v389 = vmul.f32 %v372, %v387
        %v390 = vmul.f32 %v376, %v386
        %v391 = vmul.f32 %v376, %v387
        %v392 = vmul.f32 %v380, %v386
        %v393 = vmul.f32 %v380, %v387
        %v394 = vmul.f32 %v384, %v386
        %v395 = vmul.f32 %v384, %v387
        %v396 = vadd.f32 %v362, %v388
        %v397 = vadd.f32 %v363, %v389
        %v398 = vadd.f32 %v364, %v390
        %v399 = vadd.f32 %v365, %v391
        %v400 = vadd.f32 %v366, %v392
        %v401 = vadd.f32 %v367, %v393
        %v402 = vadd.f32 %v368, %v394
        %v403 = vadd.f32 %v369, %v395
        %v404 = vmul.f32 %v396, 0.2
        %v405 = vmul.f32 %v397, 0.2
        %v406 = vmul.f32 %v398, 0.2
        %v407 = vmul.f32 %v399, 0.2
        %v408 = vmul.f32 %v400, 0.2
        %v409 = vmul.f32 %v401, 0.2
        %v410 = vmul.f32 %v402, 0.2
        %v411 = vmul.f32 %v403, 0.2
        %v412 = vmax.f32 %v396, %v404
        %v413 = vmax.f32 %v397, %v405
        %v414 = vmax.f32 %v398, %v406
        %v415 = vmax.f32 %v399, %v407
        %v416 = vmax.f32 %v400, %v408
        %v417 = vmax.f32 %v401, %v409
        %v418 = vmax.f32 %v402, %v410
        %v419 = vmax.f32 %v403, %v411
        %420 = vst [vmem:[%s188] sm:$0xff] %v412
        %vm421 = vcmask 523264
        %422 = vst.msk [vmem:[%s188 + $0x8] sm:$0xff] %vm421, %v413
        %423 = vst [vmem:[%s188 + $0x10] sm:$0xff] %v414
        %424 = vst.msk [vmem:[%s188 + $0x18] sm:$0xff] %vm421, %v415
        %425 = vst [vmem:[%s188 + $0x20] sm:$0xff] %v416
        %426 = vst.msk [vmem:[%s188 + $0x28] sm:$0xff] %vm421, %v417
        %427 = vst [vmem:[%s188 + $0x30] sm:$0xff] %v418
        %428 = vst.msk [vmem:[%s188 + $0x38] sm:$0xff] %vm421, %v419
        %s429 = sand.u32 %s109, 1
        %s430 = scalar_lea.sflag [#allocation3], %s429
        %s431 = sand.u32 %s109, 1
        %s432 = smul.addr %s431, 64
        %s433 = scalar_lea.vmem [#allocation2], %s432
        // Predicated region
        $region33: #{tpu_custom_call.1} parent=31 // pred_check
          %p434 = pneg %p119
        $region34: #{tpu_custom_call.1} parent=31 // pred_check_branch
          %436 = sbr.rel (%p434) target = $region36
        $region35: #{tpu_custom_call.1} parent=31 // pred_region
          %s437 = smul.u32 2, %s22
          %439 = vsyncadd %s430, 0
          %s440 = smul.addr %s21, 8
          %s441 = sadd.s32 %s437, %s440
          %s442 = smul.addr %s441, 8
          %s443 = scalar_lea.hbm %s3, %s442
          %s444 = sshll.u32 %s433, 4
          %s445 = int_to_ptr.vmem [resolvable:$true] %s444
          %s446 = sshll.u32 %s443, 4
          %s447 = int_to_ptr.hbm [resolvable:$true] %s446
          %452 = dma.vmem_to_hbm [thread:$0]  %s445, 1024, %s447, %s430, 256, 256, 16
        $region36: #{tpu_custom_call.1} parent=31 // pred_fallthru
          _
      $region32: #{tpu_custom_call.1} parent=5 // pred_fallthru
        _
      %p453 = scmp.le.s32.totalorder 2, %s12
      // Predicated region
      $region37: #{tpu_custom_call.1} parent=5 // pred_check
        %p454 = pneg %p453
      $region38: #{tpu_custom_call.1} parent=5 // pred_check_branch
        %456 = sbr.rel (%p454) target = $region40
      $region39: #{tpu_custom_call.1} parent=5 // pred_region
        %s457 = ssub.s32 %s12, 2
        // Predicated region
        $region41: #{tpu_custom_call.1} parent=39 // pred_check
          %p458 = pneg %p125
        $region42: #{tpu_custom_call.1} parent=39 // pred_check_branch
          %460 = sbr.rel (%p458) target = $region44
        $region43: #{tpu_custom_call.1} parent=39 // pred_region
          %s461 = sand.u32 %s110, 1
          %s462 = scalar_lea.sflag [#allocation3], %s461
          %s463 = sand.u32 %s110, 1
          %s464 = smul.addr %s463, 64
          %s465 = scalar_lea.vmem [#allocation2], %s464
          %467 = dma.done %s462, 1024
        $region44: #{tpu_custom_call.1} parent=39 // pred_fallthru
          _
      $region40: #{tpu_custom_call.1} parent=5 // pred_fallthru
        _
    $region6: #{tpu_custom_call.1} parent=1 // loop_footer
      %s16 = sadd.s32 1, %s12
    $region7: #{tpu_custom_call.1} parent=1 // loop_footer_branch
      %11 = sbr.rel target = $region3
    $region8: #{tpu_custom_call.1} parent=1 // loop_exit
      _
    %468 = vsyncpa [#allocation3], 1
    %s469 = scalar_lea.sflag [#allocation3], 1
    %470 = vsyncpa %s469, 1

</llo_original>
